<compile_context>
chip_gen: v7x
topology: tpu7x:2x2x1
jax: 0.10.0
libtpu: 0.0.40
codegen_flags: <defaults>
</compile_context>

<pallas_src>
import jax
import jax.numpy as jnp
from jax.experimental import pallas as pl
from jax.experimental.pallas import tpu as pltpu


def _round_up(x, m):
    return (x + m - 1) // m * m


def _kernel(x_ref, e1_ref, e2_ref, w1_ref, b1_ref, w2_ref, b2_ref, out_ref):
    x = x_ref[...]                                              # [TB, dim]

    # ---- layer 1: relu([x, eps1] @ W1 + b1) -- single merged MXU dot ----
    cat1 = jnp.concatenate([x, e1_ref[...]], axis=-1)           # [TB, dim+noise]
    h = jnp.dot(cat1, w1_ref[...],
                preferred_element_type=jnp.float32) + b1_ref[...]
    h = jnp.maximum(h, 0.0)                                     # [TB, hidden]

    # ---- layer 2: [h, eps2] @ W2 + b2 -- single merged MXU dot ----
    cat2 = jnp.concatenate([h, e2_ref[...]], axis=-1)           # [TB, hidden+noise]
    out = jnp.dot(cat2, w2_ref[...],
                  preferred_element_type=jnp.float32) + b2_ref[...]

    # ---- residual (out_dim == dim) ----
    out_ref[...] = (out + x).astype(out_ref.dtype)


def prepare_params(w1, b1, w2, b2):
    """One-time (parameter-load-time) conversion of PyTorch-layout weights
    ([out_features, in_features]) into pre-transposed kernel operands.
    Do NOT call per forward."""
    w1_t = jnp.asarray(w1, jnp.float32).T          # [dim+noise, hidden]
    b1_2 = jnp.asarray(b1, jnp.float32).reshape(1, -1)
    w2_t = jnp.asarray(w2, jnp.float32).T          # [hidden+noise, out]
    b2_2 = jnp.asarray(b2, jnp.float32).reshape(1, -1)
    return (w1_t, b1_2, w2_t, b2_2)


def _vmem_limit_bytes(tb, dim, hidden, noise_dim, out_dim):
    bpe = 4  # f32
    weights = ((dim + noise_dim) * hidden + hidden
               + (hidden + noise_dim) * out_dim + out_dim)
    per_step_act = tb * (dim + 2 * noise_dim + out_dim)
    # double-buffered inputs/outputs + 2x headroom for compiler temps / spills
    need = int(bpe * (2 * weights + 2 * per_step_act) * 2)
    # never below the v6e/v7x scoped default; never above v7x physical VMEM
    return min(max(need, 32 * 1024 * 1024), 64 * 1024 * 1024)


def sto_res_block(x, params, key, *, noise_std=1.0, tile_b=512,
                  return_noise=False):
    """x: [B, dim] f32. Returns [B, out_dim] (and the drawn, std-scaled eps1/eps2
    if requested)."""
    w1, b1, w2, b2 = params
    B, dim = x.shape
    k_in1, hidden = w1.shape
    k_in2, out_dim = w2.shape
    noise_dim = k_in1 - dim
    assert out_dim == dim, "kernel implements the out_dim == dim residual path"
    assert noise_dim > 0, "noise_dim == 0 branch not implemented"
    assert k_in2 == hidden + noise_dim

    # Noise drawn outside the kernel (jax.random); noise_std folded in here so
    # the kernel has no extra VPU multiplies.
    k1, k2 = jax.random.split(key)
    eps1 = jax.random.normal(k1, (B, noise_dim), jnp.float32) * noise_std
    eps2 = jax.random.normal(k2, (B, noise_dim), jnp.float32) * noise_std

    # Batch tile: multiple of 8 sublanes; sweep 256-1024 for large B, but keep
    # >= a few tiles per TensorCore so double-buffering can hide x/out DMAs.
    TB = min(int(tile_b), _round_up(B, 8))
    B_pad = _round_up(B, TB)
    if B_pad != B:
        pad = ((0, B_pad - B), (0, 0))
        x_in = jnp.pad(x, pad)
        e1_in = jnp.pad(eps1, pad)
        e2_in = jnp.pad(eps2, pad)
    else:
        x_in, e1_in, e2_in = x, eps1, eps2

    grid = (B_pad // TB,)

    out = pl.pallas_call(
        _kernel,
        out_shape=jax.ShapeDtypeStruct((B_pad, out_dim), jnp.float32),
        grid_spec=pltpu.PrefetchScalarGridSpec(
            num_scalar_prefetch=0,
            grid=grid,
            in_specs=[
                pl.BlockSpec((TB, dim), lambda i: (i, 0)),        # x tile
                pl.BlockSpec((TB, noise_dim), lambda i: (i, 0)),  # eps1 tile
                pl.BlockSpec((TB, noise_dim), lambda i: (i, 0)),  # eps2 tile
                # Weights/biases: constant index_map -> fetched once, resident.
                # (For production-sized dims, add pipeline_mode=pl.Buffered(1)
                # to single-buffer them and halve weight VMEM.)
                pl.BlockSpec(w1.shape, lambda i: (0, 0)),
                pl.BlockSpec(b1.shape, lambda i: (0, 0)),
                pl.BlockSpec(w2.shape, lambda i: (0, 0)),
                pl.BlockSpec(b2.shape, lambda i: (0, 0)),
            ],
            out_specs=pl.BlockSpec((TB, out_dim), lambda i: (i, 0)),
        ),
        compiler_params=pltpu.CompilerParams(
            dimension_semantics=("parallel",),   # shard batch tiles across TCs (v7x)
            vmem_limit_bytes=_vmem_limit_bytes(TB, dim, hidden, noise_dim, out_dim),
        ),
    )(x_in, e1_in, e2_in, w1, b1, w2, b2)

    out = out[:B]
    if return_noise:
        return out, eps1, eps2
    return out


def _reference(x, eps1, eps2, w1_torch, b1, w2_torch, b2):
    """Pure-JAX reference with torch-layout weights; eps are already std-scaled."""
    hp = jax.lax.Precision.HIGHEST
    h = jnp.maximum(
        jnp.dot(jnp.concatenate([x, eps1], axis=1), w1_torch.T, precision=hp) + b1,
        0.0)
    out = jnp.dot(jnp.concatenate([h, eps2], axis=1), w2_torch.T, precision=hp) + b2
    return out + x


if __name__ == "__main__":
    B, DIM, HID, NOISE = 256, 32, 32, 32
    NOISE_STD = 1.0

    key = jax.random.PRNGKey(0)
    kx, kw1, kb1, kw2, kb2, knoise = jax.random.split(key, 6)

    x = jax.random.normal(kx, (B, DIM), dtype=jnp.float32)

    # PyTorch-style init: U(-1/sqrt(fan_in), 1/sqrt(fan_in)), torch weight layout.
    bound1 = 1.0 / jnp.sqrt(DIM + NOISE)
    w1 = jax.random.uniform(kw1, (HID, DIM + NOISE), jnp.float32, -bound1, bound1)
    b1 = jax.random.uniform(kb1, (HID,), jnp.float32, -bound1, bound1)
    bound2 = 1.0 / jnp.sqrt(HID + NOISE)
    w2 = jax.random.uniform(kw2, (DIM, HID + NOISE), jnp.float32, -bound2, bound2)
    b2 = jax.random.uniform(kb2, (DIM,), jnp.float32, -bound2, bound2)

    # One-time parameter prep (hoisted out of the per-call path).
    params = prepare_params(w1, b1, w2, b2)

    # tile_b=64 here so the tiny demo batch still gives a multi-step grid
    # (exercises the pipelined path); production callers should sweep 256-1024.
    out, eps1, eps2 = sto_res_block(x, params, knoise, noise_std=NOISE_STD,
                                    tile_b=64, return_noise=True)
    out = jax.block_until_ready(out)

    ref = _reference(x, eps1, eps2, w1, b1, w2, b2)
    assert out.shape == (B, DIM)
    assert jnp.allclose(out, ref, atol=1e-4, rtol=1e-4), "mismatch vs reference"
    print("KERNEL_OK")
</pallas_src>

<mosaic_0001>
module attributes {stable_mosaic.version = 11 : i64} {
  func.func @_kernel(%arg0: i32, %arg1: memref<64x32xf32, #tpu.memory_space<vmem>>, %arg2: memref<64x32xf32, #tpu.memory_space<vmem>>, %arg3: memref<64x32xf32, #tpu.memory_space<vmem>>, %arg4: memref<64x32xf32, #tpu.memory_space<vmem>>, %arg5: memref<1x32xf32, #tpu.memory_space<vmem>>, %arg6: memref<64x32xf32, #tpu.memory_space<vmem>>, %arg7: memref<1x32xf32, #tpu.memory_space<vmem>>, %arg8: memref<64x32xf32, #tpu.memory_space<vmem>>) attributes {dimension_semantics = [#tpu.dimension_semantics<parallel>], iteration_bounds = array<i64: 4>, scalar_prefetch = 0 : i64, scratch_operands = 0 : i64, tpu.core_type = #tpu.core_type<tc>, window_params = [{transform_indices = @transform_0, window_bounds = array<i64: 64, 32>}, {transform_indices = @transform_1, window_bounds = array<i64: 64, 32>}, {transform_indices = @transform_2, window_bounds = array<i64: 64, 32>}, {pipeline_mode = #tpu.pipeline_mode<synchronous>, transform_indices = @transform_3, window_bounds = array<i64: 64, 32>}, {pipeline_mode = #tpu.pipeline_mode<synchronous>, transform_indices = @transform_4, window_bounds = array<i64: 1, 32>}, {pipeline_mode = #tpu.pipeline_mode<synchronous>, transform_indices = @transform_5, window_bounds = array<i64: 64, 32>}, {pipeline_mode = #tpu.pipeline_mode<synchronous>, transform_indices = @transform_6, window_bounds = array<i64: 1, 32>}, {transform_indices = @transform_7, window_bounds = array<i64: 64, 32>}]} {
    %c0 = arith.constant 0 : index
    %c0_0 = arith.constant 0 : index
    %0 = vector.load %arg1[%c0, %c0_0] : memref<64x32xf32, #tpu.memory_space<vmem>>, vector<64x32xf32>
    %c0_1 = arith.constant 0 : index
    %c0_2 = arith.constant 0 : index
    %1 = vector.load %arg2[%c0_1, %c0_2] : memref<64x32xf32, #tpu.memory_space<vmem>>, vector<64x32xf32>
    %2 = tpu.concatenate %0, %1 in 1 : vector<64x32xf32>, vector<64x32xf32> -> vector<64x64xf32>
    %c0_3 = arith.constant 0 : index
    %c0_4 = arith.constant 0 : index
    %3 = vector.load %arg4[%c0_3, %c0_4] : memref<64x32xf32, #tpu.memory_space<vmem>>, vector<64x32xf32>
    %cst = arith.constant dense<0.000000e+00> : vector<64x32xf32>
    %4 = tpu.matmul %2, %3, %cst {dimension_numbers = #tpu.dot_dimension_numbers<[1], [0], [0], [1], [0, 0, 1, 1], [], []>} : vector<64x64xf32>, vector<64x32xf32>, vector<64x32xf32> -> vector<64x32xf32>
    %c0_5 = arith.constant 0 : index
    %c0_6 = arith.constant 0 : index
    %5 = vector.load %arg5[%c0_5, %c0_6] : memref<1x32xf32, #tpu.memory_space<vmem>>, vector<1x32xf32>
    %6 = vector.broadcast %5 : vector<1x32xf32> to vector<64x32xf32>
    %7 = arith.addf %4, %6 : vector<64x32xf32>
    %cst_7 = arith.constant 0.000000e+00 : f32
    %8 = vector.broadcast %cst_7 : f32 to vector<64x32xf32>
    %9 = arith.maximumf %7, %8 : vector<64x32xf32>
    %c0_8 = arith.constant 0 : index
    %c0_9 = arith.constant 0 : index
    %10 = vector.load %arg3[%c0_8, %c0_9] : memref<64x32xf32, #tpu.memory_space<vmem>>, vector<64x32xf32>
    %11 = tpu.concatenate %9, %10 in 1 : vector<64x32xf32>, vector<64x32xf32> -> vector<64x64xf32>
    %c0_10 = arith.constant 0 : index
    %c0_11 = arith.constant 0 : index
    %12 = vector.load %arg6[%c0_10, %c0_11] : memref<64x32xf32, #tpu.memory_space<vmem>>, vector<64x32xf32>
    %cst_12 = arith.constant dense<0.000000e+00> : vector<64x32xf32>
    %13 = tpu.matmul %11, %12, %cst_12 {dimension_numbers = #tpu.dot_dimension_numbers<[1], [0], [0], [1], [0, 0, 1, 1], [], []>} : vector<64x64xf32>, vector<64x32xf32>, vector<64x32xf32> -> vector<64x32xf32>
    %c0_13 = arith.constant 0 : index
    %c0_14 = arith.constant 0 : index
    %14 = vector.load %arg7[%c0_13, %c0_14] : memref<1x32xf32, #tpu.memory_space<vmem>>, vector<1x32xf32>
    %15 = vector.broadcast %14 : vector<1x32xf32> to vector<64x32xf32>
    %16 = arith.addf %13, %15 : vector<64x32xf32>
    %17 = arith.addf %16, %0 : vector<64x32xf32>
    %c0_15 = arith.constant 0 : index
    %c0_16 = arith.constant 0 : index
    %18 = vector.load %arg8[%c0_15, %c0_16] : memref<64x32xf32, #tpu.memory_space<vmem>>, vector<64x32xf32>
    tpu.vector_store %arg8[%c0_15, %c0_16], %17 {strides = array<i32>} : memref<64x32xf32, #tpu.memory_space<vmem>>, vector<64x32xf32>,
    return
  }
  func.func @transform_0(%arg0: i32) -> (i32, i32) {
    %c0_i32 = arith.constant 0 : i32
    %c0_i32_0 = arith.constant 0 : i32
    return %arg0, %c0_i32 : i32, i32
  }
  func.func @transform_1(%arg0: i32) -> (i32, i32) {
    %c0_i32 = arith.constant 0 : i32
    %c0_i32_0 = arith.constant 0 : i32
    return %arg0, %c0_i32 : i32, i32
  }
  func.func @transform_2(%arg0: i32) -> (i32, i32) {
    %c0_i32 = arith.constant 0 : i32
    %c0_i32_0 = arith.constant 0 : i32
    return %arg0, %c0_i32 : i32, i32
  }
  func.func @transform_3(%arg0: i32) -> (i32, i32) {
    %c0_i32 = arith.constant 0 : i32
    %c0_i32_0 = arith.constant 0 : i32
    %c0_i32_1 = arith.constant 0 : i32
    return %c0_i32, %c0_i32_0 : i32, i32
  }
  func.func @transform_4(%arg0: i32) -> (i32, i32) {
    %c0_i32 = arith.constant 0 : i32
    %c0_i32_0 = arith.constant 0 : i32
    %c0_i32_1 = arith.constant 0 : i32
    return %c0_i32, %c0_i32_0 : i32, i32
  }
  func.func @transform_5(%arg0: i32) -> (i32, i32) {
    %c0_i32 = arith.constant 0 : i32
    %c0_i32_0 = arith.constant 0 : i32
    %c0_i32_1 = arith.constant 0 : i32
    return %c0_i32, %c0_i32_0 : i32, i32
  }
  func.func @transform_6(%arg0: i32) -> (i32, i32) {
    %c0_i32 = arith.constant 0 : i32
    %c0_i32_0 = arith.constant 0 : i32
    %c0_i32_1 = arith.constant 0 : i32
    return %c0_i32, %c0_i32_0 : i32, i32
  }
  func.func @transform_7(%arg0: i32) -> (i32, i32) {
    %c0_i32 = arith.constant 0 : i32
    %c0_i32_0 = arith.constant 0 : i32
    return %arg0, %c0_i32 : i32, i32
  }
}

</mosaic_0001>

<llo_original>
// kernel: tpu_custom_call.1
$region0: #{tpu_custom_call.1}
  #allocation0 [shape = 'u32[]', space=smem, size = 0x4, offset = 0x4, fixed_abs, tag = 'smem constant byte address 0x4 - core index']
  #allocation1 [shape = 'u32[144,128]{1,0:T(1,128)}', space=vmem, size = 0x12000, scoped, tag = 'internal scratch']
  %s0 = inlined_call_operand.vmem [shape: f32[256,32], index: 0, kind: input, shape index: {}]
  %s1 = inlined_call_operand.vmem [shape: f32[256,32], index: 1, kind: input, shape index: {}]
  %s2 = inlined_call_operand.vmem [shape: f32[256,32], index: 2, kind: input, shape index: {}]
  %s3 = inlined_call_operand.vmem [shape: f32[64,32], index: 3, kind: input, shape index: {}]
  %s4 = inlined_call_operand.vmem [shape: f32[1,32], index: 4, kind: input, shape index: {}]
  %s5 = inlined_call_operand.vmem [shape: f32[64,32], index: 5, kind: input, shape index: {}]
  %s6 = inlined_call_operand.vmem [shape: f32[1,32], index: 6, kind: input, shape index: {}]
  %s7 = inlined_call_operand.vmem [shape: f32[256,32], index: 7, kind: output, shape index: {}]
  %s8 = sld [smem:[#allocation0]]
  $region61: #{tpu_custom_call.1} parent=0
    _
  %s10 = ssub.s32 1, %s8
  %s11 = scalar_select 0, %s10, %s8
  loop: start=0, step=1, limit=6
  $region2: #{tpu_custom_call.1} parent=0 // loop_pre_header
    _
  $region3: #{tpu_custom_call.1} parent=0 // loop_header
    %s13 = sphi 0, %s17
    %p14 = scmp.ge.s32.totalorder %s13, 6
    %s23 = sphi 0, %s25
    %s26 = sphi 0, %s23
    %s27 = sphi 0, %s26
    %s43 = sphi 0, %s27
    %s49 = sphi 0, %s51
    %s52 = sphi 0, %s49
    %s53 = sphi 0, %s52
    %s69 = sphi 0, %s53
    %s75 = sphi 0, %s77
    %s78 = sphi 0, %s75
    %s79 = sphi 0, %s78
    %s95 = sphi 0, %s79
    %s99 = sphi 0, %s99
    %s101 = sphi 0, %s99
    %s102 = sphi 0, %s101
    %s116 = sphi 0, %s102
    %s120 = sphi 0, %s120
    %s122 = sphi 0, %s120
    %s123 = sphi 0, %s122
    %s137 = sphi 0, %s123
    %s141 = sphi 0, %s141
    %s143 = sphi 0, %s141
    %s144 = sphi 0, %s143
    %s158 = sphi 0, %s144
    %s162 = sphi 0, %s162
    %s164 = sphi 0, %s162
    %s165 = sphi 0, %s164
    %s179 = sphi 0, %s165
    %s185 = sphi 0, %s187
    %s188 = sphi 0, %s185
    %s189 = sphi 0, %s188
    %s205 = sphi 0, %s189
  $region4: #{tpu_custom_call.1} parent=0 // loop_header_branch
    %16 = sbr.rel (%p14) target = $region8
  $region5: #{tpu_custom_call.1} parent=0 // loop_body
    %s18 = ssub.s32 %s13, 1
    %s19 = ssub.s32 %s13, 2
    %s20 = sadd.s32 %s13, 1
    %s21 = ssub.s32 %s13, %s20
    %p22 = scmp.eq.s32.totalorder %s21, 0
    %s24 = sadd.s32 %s23, 1
    %s25 = scalar_select %p22, %s23, %s24
    %p28 = pneg %p22
    %p29 = scmp.eq.s32.totalorder %s13, 3
    %p30 = por %p28, %p29
    %p31 = scmp.ne.s32.totalorder %s23, %s26
    %p32 = scmp.eq.s32.totalorder %s13, 0
    %p33 = por %p31, %p32
    %p34 = scmp.ne.s32.totalorder %s23, %s26
    %p35 = scmp.eq.s32.totalorder %s18, 3
    %p36 = por %p34, %p35
    %p37 = scmp.ne.s32.totalorder %s26, %s27
    %p38 = scmp.eq.s32.totalorder %s18, 0
    %p39 = por %p37, %p38
    %p40 = scmp.ne.s32.totalorder %s26, %s27
    %p41 = scmp.eq.s32.totalorder %s19, 3
    %p42 = por %p40, %p41
    %p44 = scmp.ne.s32.totalorder %s27, %s43
    %p45 = scmp.eq.s32.totalorder %s19, 0
    %p46 = por %p44, %p45
    %s47 = ssub.s32 %s13, %s20
    %p48 = scmp.eq.s32.totalorder %s47, 0
    %s50 = sadd.s32 %s49, 1
    %s51 = scalar_select %p48, %s49, %s50
    %p54 = pneg %p48
    %p55 = scmp.eq.s32.totalorder %s13, 3
    %p56 = por %p54, %p55
    %p57 = scmp.ne.s32.totalorder %s49, %s52
    %p58 = scmp.eq.s32.totalorder %s13, 0
    %p59 = por %p57, %p58
    %p60 = scmp.ne.s32.totalorder %s49, %s52
    %p61 = scmp.eq.s32.totalorder %s18, 3
    %p62 = por %p60, %p61
    %p63 = scmp.ne.s32.totalorder %s52, %s53
    %p64 = scmp.eq.s32.totalorder %s18, 0
    %p65 = por %p63, %p64
    %p66 = scmp.ne.s32.totalorder %s52, %s53
    %p67 = scmp.eq.s32.totalorder %s19, 3
    %p68 = por %p66, %p67
    %p70 = scmp.ne.s32.totalorder %s53, %s69
    %p71 = scmp.eq.s32.totalorder %s19, 0
    %p72 = por %p70, %p71
    %s73 = ssub.s32 %s13, %s20
    %p74 = scmp.eq.s32.totalorder %s73, 0
    %s76 = sadd.s32 %s75, 1
    %s77 = scalar_select %p74, %s75, %s76
    %p80 = pneg %p74
    %p81 = scmp.eq.s32.totalorder %s13, 3
    %p82 = por %p80, %p81
    %p83 = scmp.ne.s32.totalorder %s75, %s78
    %p84 = scmp.eq.s32.totalorder %s13, 0
    %p85 = por %p83, %p84
    %p86 = scmp.ne.s32.totalorder %s75, %s78
    %p87 = scmp.eq.s32.totalorder %s18, 3
    %p88 = por %p86, %p87
    %p89 = scmp.ne.s32.totalorder %s78, %s79
    %p90 = scmp.eq.s32.totalorder %s18, 0
    %p91 = por %p89, %p90
    %p92 = scmp.ne.s32.totalorder %s78, %s79
    %p93 = scmp.eq.s32.totalorder %s19, 3
    %p94 = por %p92, %p93
    %p96 = scmp.ne.s32.totalorder %s79, %s95
    %p97 = scmp.eq.s32.totalorder %s19, 0
    %p98 = por %p96, %p97
    %s100 = sadd.s32 %s99, 1
    %p103 = scmp.eq.s32.totalorder %s13, 3
    %p104 = scmp.ne.s32.totalorder %s99, %s101
    %p105 = scmp.eq.s32.totalorder %s13, 0
    %p106 = por %p104, %p105
    %p107 = scmp.ne.s32.totalorder %s99, %s101
    %p108 = scmp.eq.s32.totalorder %s18, 3
    %p109 = por %p107, %p108
    %p110 = scmp.ne.s32.totalorder %s101, %s102
    %p111 = scmp.eq.s32.totalorder %s18, 0
    %p112 = por %p110, %p111
    %p113 = scmp.ne.s32.totalorder %s101, %s102
    %p114 = scmp.eq.s32.totalorder %s19, 3
    %p115 = por %p113, %p114
    %p117 = scmp.ne.s32.totalorder %s102, %s116
    %p118 = scmp.eq.s32.totalorder %s19, 0
    %p119 = por %p117, %p118
    %s121 = sadd.s32 %s120, 1
    %p124 = scmp.eq.s32.totalorder %s13, 3
    %p125 = scmp.ne.s32.totalorder %s120, %s122
    %p126 = scmp.eq.s32.totalorder %s13, 0
    %p127 = por %p125, %p126
    %p128 = scmp.ne.s32.totalorder %s120, %s122
    %p129 = scmp.eq.s32.totalorder %s18, 3
    %p130 = por %p128, %p129
    %p131 = scmp.ne.s32.totalorder %s122, %s123
    %p132 = scmp.eq.s32.totalorder %s18, 0
    %p133 = por %p131, %p132
    %p134 = scmp.ne.s32.totalorder %s122, %s123
    %p135 = scmp.eq.s32.totalorder %s19, 3
    %p136 = por %p134, %p135
    %p138 = scmp.ne.s32.totalorder %s123, %s137
    %p139 = scmp.eq.s32.totalorder %s19, 0
    %p140 = por %p138, %p139
    %s142 = sadd.s32 %s141, 1
    %p145 = scmp.eq.s32.totalorder %s13, 3
    %p146 = scmp.ne.s32.totalorder %s141, %s143
    %p147 = scmp.eq.s32.totalorder %s13, 0
    %p148 = por %p146, %p147
    %p149 = scmp.ne.s32.totalorder %s141, %s143
    %p150 = scmp.eq.s32.totalorder %s18, 3
    %p151 = por %p149, %p150
    %p152 = scmp.ne.s32.totalorder %s143, %s144
    %p153 = scmp.eq.s32.totalorder %s18, 0
    %p154 = por %p152, %p153
    %p155 = scmp.ne.s32.totalorder %s143, %s144
    %p156 = scmp.eq.s32.totalorder %s19, 3
    %p157 = por %p155, %p156
    %p159 = scmp.ne.s32.totalorder %s144, %s158
    %p160 = scmp.eq.s32.totalorder %s19, 0
    %p161 = por %p159, %p160
    %s163 = sadd.s32 %s162, 1
    %p166 = scmp.eq.s32.totalorder %s13, 3
    %p167 = scmp.ne.s32.totalorder %s162, %s164
    %p168 = scmp.eq.s32.totalorder %s13, 0
    %p169 = por %p167, %p168
    %p170 = scmp.ne.s32.totalorder %s162, %s164
    %p171 = scmp.eq.s32.totalorder %s18, 3
    %p172 = por %p170, %p171
    %p173 = scmp.ne.s32.totalorder %s164, %s165
    %p174 = scmp.eq.s32.totalorder %s18, 0
    %p175 = por %p173, %p174
    %p176 = scmp.ne.s32.totalorder %s164, %s165
    %p177 = scmp.eq.s32.totalorder %s19, 3
    %p178 = por %p176, %p177
    %p180 = scmp.ne.s32.totalorder %s165, %s179
    %p181 = scmp.eq.s32.totalorder %s19, 0
    %p182 = por %p180, %p181
    %s183 = ssub.s32 %s13, %s20
    %p184 = scmp.eq.s32.totalorder %s183, 0
    %s186 = sadd.s32 %s185, 1
    %s187 = scalar_select %p184, %s185, %s186
    %p190 = pneg %p184
    %p191 = scmp.eq.s32.totalorder %s13, 3
    %p192 = por %p190, %p191
    %p193 = scmp.ne.s32.totalorder %s185, %s188
    %p194 = scmp.eq.s32.totalorder %s13, 0
    %p195 = por %p193, %p194
    %p196 = scmp.ne.s32.totalorder %s185, %s188
    %p197 = scmp.eq.s32.totalorder %s18, 3
    %p198 = por %p196, %p197
    %p199 = scmp.ne.s32.totalorder %s188, %s189
    %p200 = scmp.eq.s32.totalorder %s18, 0
    %p201 = por %p199, %p200
    %p202 = scmp.ne.s32.totalorder %s188, %s189
    %p203 = scmp.eq.s32.totalorder %s19, 3
    %p204 = por %p202, %p203
    %p206 = scmp.ne.s32.totalorder %s189, %s205
    %p207 = scmp.eq.s32.totalorder %s19, 0
    %p208 = por %p206, %p207
    %p209 = scmp.le.s32.totalorder 1, %s13
    %p210 = scmp.lt.s32.totalorder %s13, 5
    %p211 = pnand %p209, %p210
    %p212 = pneg %p211
    // Predicated region
    $region9: #{tpu_custom_call.1} parent=5 // pred_check
      _
    $region10: #{tpu_custom_call.1} parent=5 // pred_check_branch
      %214 = sbr.rel (%p211) target = $region12
    $region11: #{tpu_custom_call.1} parent=5 // pred_region
      %s215 = ssub.s32 %s13, 1
      // Predicated region
      $region13: #{tpu_custom_call.1} parent=11 // pred_check
        %p216 = pneg %p112
      $region14: #{tpu_custom_call.1} parent=11 // pred_check_branch
        %218 = sbr.rel (%p216) target = $region16
      $region15: #{tpu_custom_call.1} parent=11 // pred_region
        _
      $region16: #{tpu_custom_call.1} parent=11 // pred_fallthru
        _
      // Predicated region
      $region17: #{tpu_custom_call.1} parent=11 // pred_check
        %p219 = pneg %p133
      $region18: #{tpu_custom_call.1} parent=11 // pred_check_branch
        %221 = sbr.rel (%p219) target = $region20
      $region19: #{tpu_custom_call.1} parent=11 // pred_region
        _
      $region20: #{tpu_custom_call.1} parent=11 // pred_fallthru
        _
      // Predicated region
      $region21: #{tpu_custom_call.1} parent=11 // pred_check
        %p222 = pneg %p154
      $region22: #{tpu_custom_call.1} parent=11 // pred_check_branch
        %224 = sbr.rel (%p222) target = $region24
      $region23: #{tpu_custom_call.1} parent=11 // pred_region
        _
      $region24: #{tpu_custom_call.1} parent=11 // pred_fallthru
        _
      // Predicated region
      $region25: #{tpu_custom_call.1} parent=11 // pred_check
        %p225 = pneg %p175
      $region26: #{tpu_custom_call.1} parent=11 // pred_check_branch
        %227 = sbr.rel (%p225) target = $region28
      $region27: #{tpu_custom_call.1} parent=11 // pred_region
        _
      $region28: #{tpu_custom_call.1} parent=11 // pred_fallthru
        _
    $region12: #{tpu_custom_call.1} parent=5 // pred_fallthru
      _
    %p228 = scmp.lt.s32.totalorder %s13, 4
    // Predicated region
    $region29: #{tpu_custom_call.1} parent=5 // pred_check
      %p229 = pneg %p228
    $region30: #{tpu_custom_call.1} parent=5 // pred_check_branch
      %231 = sbr.rel (%p229) target = $region32
    $region31: #{tpu_custom_call.1} parent=5 // pred_region
      // Predicated region
      $region33: #{tpu_custom_call.1} parent=31 // pred_check
        %p232 = pneg %p33
      $region34: #{tpu_custom_call.1} parent=31 // pred_check_branch
        %234 = sbr.rel (%p232) target = $region36
      $region35: #{tpu_custom_call.1} parent=31 // pred_region
        %s235 = smul.u32 8, %s13
        %p236 = scmp.lt.s32.totalorder %s235, 31
        %s237 = scalar_select %p236, %s235, 31
        %s238 = smul.addr %s237, 8
        %s239 = scalar_lea.vmem %s0, %s238
        %s240 = smul.u32 8, %s13
      $region36: #{tpu_custom_call.1} parent=31 // pred_fallthru
        _
      // Predicated region
      $region37: #{tpu_custom_call.1} parent=31 // pred_check
        %p241 = pneg %p59
      $region38: #{tpu_custom_call.1} parent=31 // pred_check_branch
        %243 = sbr.rel (%p241) target = $region40
      $region39: #{tpu_custom_call.1} parent=31 // pred_region
        %s244 = smul.u32 8, %s13
        %p245 = scmp.lt.s32.totalorder %s244, 31
        %s246 = scalar_select %p245, %s244, 31
        %s247 = smul.addr %s246, 8
        %s248 = scalar_lea.vmem %s1, %s247
        %s249 = smul.u32 8, %s13
      $region40: #{tpu_custom_call.1} parent=31 // pred_fallthru
        _
      // Predicated region
      $region41: #{tpu_custom_call.1} parent=31 // pred_check
        %p250 = pneg %p85
      $region42: #{tpu_custom_call.1} parent=31 // pred_check_branch
        %252 = sbr.rel (%p250) target = $region44
      $region43: #{tpu_custom_call.1} parent=31 // pred_region
        %s253 = smul.u32 8, %s13
        %p254 = scmp.lt.s32.totalorder %s253, 31
        %s255 = scalar_select %p254, %s253, 31
        %s256 = smul.addr %s255, 8
        %s257 = scalar_lea.vmem %s2, %s256
        %s258 = smul.u32 8, %s13
      $region44: #{tpu_custom_call.1} parent=31 // pred_fallthru
        _
    $region32: #{tpu_custom_call.1} parent=5 // pred_fallthru
      _
    %p259 = scmp.le.s32.totalorder 1, %s13
    %p260 = scmp.lt.s32.totalorder %s13, 5
    %p261 = pnand %p259, %p260
    %p262 = pneg %p261
    // Predicated region
    $region45: #{tpu_custom_call.1} parent=5 // pred_check
      _
    $region46: #{tpu_custom_call.1} parent=5 // pred_check_branch
      %264 = sbr.rel (%p261) target = $region48
    $region47: #{tpu_custom_call.1} parent=5 // pred_region
      %s265 = ssub.s32 %s13, 1
      %s266 = smul.u32 8, %s18
      %p267 = scmp.lt.s32.totalorder %s266, 31
      %s268 = scalar_select %p267, %s266, 31
      %s269 = smul.addr %s268, 8
      %s270 = scalar_lea.vmem %s0, %s269
      %p271 = pneg %p39
      %p272 = pneg %p36
      %s273 = smul.u32 8, %s18
      %p274 = scmp.lt.s32.totalorder %s273, 31
      %s275 = scalar_select %p274, %s273, 31
      %s276 = smul.addr %s275, 8
      %s277 = scalar_lea.vmem %s1, %s276
      %p278 = pneg %p65
      %p279 = pneg %p62
      %s280 = smul.u32 8, %s18
      %p281 = scmp.lt.s32.totalorder %s280, 31
      %s282 = scalar_select %p281, %s280, 31
      %s283 = smul.addr %s282, 8
      %s284 = scalar_lea.vmem %s2, %s283
      %p285 = pneg %p91
      %p286 = pneg %p88
      %p287 = pneg %p112
      %p288 = pneg %p109
      %p289 = pneg %p133
      %p290 = pneg %p130
      %p291 = pneg %p154
      %p292 = pneg %p151
      %p293 = pneg %p175
      %p294 = pneg %p172
      %p295 = pneg %p201
      %p296 = pneg %p198
      %s297 = smul.u32 8, %s18
      %p298 = scmp.lt.s32.totalorder %s297, 31
      %s299 = scalar_select %p298, %s297, 31
      %s300 = smul.addr %s299, 8
      %s301 = scalar_lea.vmem %s7, %s300
      %s302 = smul.u32 8, %s18
      %p303 = scmp.lt.s32.totalorder %s302, 31
      %s304 = scalar_select %p303, %s302, 31
      %s305 = smul.addr %s304, 8
      %s306 = scalar_lea.vmem %s0, %s305
      %s307 = smul.u32 8, %s18
      %s308 = smul.u32 8, %s18
      %p309 = scmp.lt.s32.totalorder %s308, 31
      %s310 = scalar_select %p309, %s308, 31
      %s311 = smul.addr %s310, 8
      %s312 = scalar_lea.vmem %s1, %s311
      %s313 = smul.u32 8, %s18
      %s314 = smul.u32 8, %s18
      %p315 = scmp.lt.s32.totalorder %s314, 31
      %s316 = scalar_select %p315, %s314, 31
      %s317 = smul.addr %s316, 8
      %s318 = scalar_lea.vmem %s2, %s317
      %s319 = smul.u32 8, %s18
      %s320 = smul.u32 8, %s18
      %p321 = scmp.lt.s32.totalorder %s320, 31
      %s322 = scalar_select %p321, %s320, 31
      %s323 = smul.addr %s322, 8
      %s324 = scalar_lea.vmem %s7, %s323
      %s325 = smul.u32 8, %s18
      %v326 = vld [vmem:[%s306] sm:$0xff]
      %v327 = vld [vmem:[%s306 + $0x8] sm:$0xff]
      %v328 = vld [vmem:[%s306 + $0x10] sm:$0xff]
      %v329 = vld [vmem:[%s306 + $0x18] sm:$0xff]
      %v330 = vld [vmem:[%s306 + $0x20] sm:$0xff]
      %v331 = vld [vmem:[%s306 + $0x28] sm:$0xff]
      %v332 = vld [vmem:[%s306 + $0x30] sm:$0xff]
      %v333 = vld [vmem:[%s306 + $0x38] sm:$0xff]
      %v334 = vld [vmem:[%s312] sm:$0xff]
      %v335 = vld [vmem:[%s312 + $0x8] sm:$0xff]
      %v336 = vld [vmem:[%s312 + $0x10] sm:$0xff]
      %v337 = vld [vmem:[%s312 + $0x18] sm:$0xff]
      %v338 = vld [vmem:[%s312 + $0x20] sm:$0xff]
      %v339 = vld [vmem:[%s312 + $0x28] sm:$0xff]
      %v340 = vld [vmem:[%s312 + $0x30] sm:$0xff]
      %v341 = vld [vmem:[%s312 + $0x38] sm:$0xff]
      %350 = vrot.lane.b32.xlu0 %v334, 32
      %v351 = vpop.permute.xlu0 %350
      %352 = vrot.lane.b32.xlu0 %v335, 32
      %v353 = vpop.permute.xlu0 %352
      %354 = vrot.lane.b32.xlu0 %v336, 32
      %v355 = vpop.permute.xlu0 %354
      %356 = vrot.lane.b32.xlu0 %v337, 32
      %v357 = vpop.permute.xlu0 %356
      %358 = vrot.lane.b32.xlu0 %v338, 32
      %v359 = vpop.permute.xlu0 %358
      %360 = vrot.lane.b32.xlu0 %v339, 32
      %v361 = vpop.permute.xlu0 %360
      %362 = vrot.lane.b32.xlu0 %v340, 32
      %v363 = vpop.permute.xlu0 %362
      %364 = vrot.lane.b32.xlu0 %v341, 32
      %v365 = vpop.permute.xlu0 %364
      %vm374 = vcmask 261120
      %v375 = vsel %vm374, %v326, %v351
      %v376 = vsel %vm374, %v327, %v353
      %v377 = vsel %vm374, %v328, %v355
      %v378 = vsel %vm374, %v329, %v357
      %v379 = vsel %vm374, %v330, %v359
      %v380 = vsel %vm374, %v331, %v361
      %v381 = vsel %vm374, %v332, %v363
      %v382 = vsel %vm374, %v333, %v365
      %v383 = vld [vmem:[%s3] sm:$0xff]
      %v384 = vld [vmem:[%s3 + $0x8] sm:$0xff]
      %v385 = vld [vmem:[%s3 + $0x10] sm:$0xff]
      %v386 = vld [vmem:[%s3 + $0x18] sm:$0xff]
      %v387 = vld [vmem:[%s3 + $0x20] sm:$0xff]
      %v388 = vld [vmem:[%s3 + $0x28] sm:$0xff]
      %v389 = vld [vmem:[%s3 + $0x30] sm:$0xff]
      %v390 = vld [vmem:[%s3 + $0x38] sm:$0xff]
      %v391 = vld [vmem:[%s4] sm:$0x1]
      %v393 = vlaneseq
      %v394 = vshrl.u32 %v393, 7
      %v395 = vsub.s32 0, %v394
      %v396 = vrot.slane %v391, %v395
      %vm398 = vcmask 523264
      %v400 = vsel %vm398, %v375, 0
      %v403 = vsel %vm398, %v376, 0
      %v406 = vsel %vm398, %v377, 0
      %v409 = vsel %vm398, %v378, 0
      %v412 = vsel %vm398, %v379, 0
      %v415 = vsel %vm398, %v380, 0
      %v418 = vsel %vm398, %v381, 0
      %v421 = vsel %vm398, %v382, 0
      %423 = vmatprep.subr.mxu0 0.0
      %424 = vmatpush1.msra.mxu0 %v383
      %425 = vmatprep.subr.mxu0 0.0
      %426 = vmatpush1.msra.mxu0 %v384
      %427 = vmatprep.subr.mxu0 0.0
      %428 = vmatpush1.msra.mxu0 %v385
      %429 = vmatprep.subr.mxu0 0.0
      %430 = vmatpush1.msra.mxu0 %v386
      %431 = vmatprep.subr.mxu0 0.0
      %432 = vmatpush1.msra.mxu0 %v387
      %433 = vmatprep.subr.mxu0 0.0
      %434 = vmatpush1.msra.mxu0 %v388
      %435 = vmatprep.subr.mxu0 0.0
      %436 = vmatpush1.msra.mxu0 %v389
      %437 = vmatprep.subr.mxu0 0.0
      %438 = vmatpush1.msra.mxu0 %v390
      %439 = vmatprep.subr.mxu0 0.0
      %440 = vmatpush1.msra.mxu0 0.0
      %441 = vmatprep.subr.mxu0 0.0
      %442 = vmatpush1.msra.mxu0 0.0
      %443 = vmatprep.subr.mxu0 0.0
      %444 = vmatpush1.msra.mxu0 0.0
      %445 = vmatprep.subr.mxu0 0.0
      %446 = vmatpush1.msra.mxu0 0.0
      %447 = vmatprep.subr.mxu0 0.0
      %448 = vmatpush1.msra.mxu0 0.0
      %449 = vmatprep.subr.mxu0 0.0
      %450 = vmatpush1.msra.mxu0 0.0
      %451 = vmatprep.subr.mxu0 0.0
      %452 = vmatpush1.msra.mxu0 0.0
      %453 = vmatprep.subr.mxu0 0.0
      %454 = vmatpush1.msra.mxu0 0.0
      %455 = vmatprep.subr.mxu0 0.0
      %456 = vmatpush1.msra.mxu0 0.0
      %457 = vmatprep.subr.mxu0 0.0
      %458 = vmatpush1.msra.mxu0 0.0
      %459 = vmatprep.subr.mxu0 0.0
      %460 = vmatpush1.msra.mxu0 0.0
      %461 = vmatprep.subr.mxu0 0.0
      %462 = vmatpush1.msra.mxu0 0.0
      %463 = vmatprep.subr.mxu0 0.0
      %464 = vmatpush1.msra.mxu0 0.0
      %465 = vmatprep.subr.mxu0 0.0
      %466 = vmatpush1.msra.mxu0 0.0
      %467 = vmatprep.subr.mxu0 0.0
      %468 = vmatpush1.msra.mxu0 0.0
      %469 = vmatprep.subr.mxu0 0.0
      %470 = vmatpush1.msra.mxu0 0.0
      %471 = vmatprep.subr.mxu0 0.0
      %472 = vmatpush1.msra.mxu0 0.0
      %473 = vmatprep.subr.mxu0 0.0
      %474 = vmatpush1.msra.mxu0 0.0
      %475 = vmatprep.subr.mxu0 0.0
      %476 = vmatpush1.msra.mxu0 0.0
      %477 = vmatprep.subr.mxu0 0.0
      %478 = vmatpush1.msra.mxu0 0.0
      %479 = vmatprep.subr.mxu0 0.0
      %480 = vmatpush1.msra.mxu0 0.0
      %481 = vmatprep.subr.mxu0 0.0
      %482 = vmatpush1.msra.mxu0 0.0
      %483 = vmatprep.subr.mxu0 0.0
      %484 = vmatpush1.msra.mxu0 0.0
      %485 = vmatprep.subr.mxu0 0.0
      %486 = vmatpush1.msra.mxu0 0.0
      %487 = vmatprep.mubr.f32.mxu0 0.0
      %488 = vmatmul.mubr.f32.gmra.mrb[0].mxu0 %v400
      %v489 = vpop.f32.mrb[0].mxu0
      %v490 = vadd.f32 %v396, %v489
      %v491 = vpop.f32.mrb[0].mxu0
      %492 = vmatprep.mubr.f32.mxu0 0.0
      %493 = vmatmul.mubr.f32.gmra.mrb[0].mxu0 %v403
      %v494 = vpop.f32.mrb[0].mxu0
      %v495 = vadd.f32 %v396, %v494
      %v496 = vpop.f32.mrb[0].mxu0
      %497 = vmatprep.mubr.f32.mxu0 0.0
      %498 = vmatmul.mubr.f32.gmra.mrb[0].mxu0 %v406
      %v499 = vpop.f32.mrb[0].mxu0
      %v500 = vadd.f32 %v396, %v499
      %v501 = vpop.f32.mrb[0].mxu0
      %502 = vmatprep.mubr.f32.mxu0 0.0
      %503 = vmatmul.mubr.f32.gmra.mrb[0].mxu0 %v409
      %v504 = vpop.f32.mrb[0].mxu0
      %v505 = vadd.f32 %v396, %v504
      %v506 = vpop.f32.mrb[0].mxu0
      %507 = vmatprep.mubr.f32.mxu0 0.0
      %508 = vmatmul.mubr.f32.gmra.mrb[0].mxu0 %v412
      %v509 = vpop.f32.mrb[0].mxu0
      %v510 = vadd.f32 %v396, %v509
      %v511 = vpop.f32.mrb[0].mxu0
      %512 = vmatprep.mubr.f32.mxu0 0.0
      %513 = vmatmul.mubr.f32.gmra.mrb[0].mxu0 %v415
      %v514 = vpop.f32.mrb[0].mxu0
      %v515 = vadd.f32 %v396, %v514
      %v516 = vpop.f32.mrb[0].mxu0
      %517 = vmatprep.mubr.f32.mxu0 0.0
      %518 = vmatmul.mubr.f32.gmra.mrb[0].mxu0 %v418
      %v519 = vpop.f32.mrb[0].mxu0
      %v520 = vadd.f32 %v396, %v519
      %v521 = vpop.f32.mrb[0].mxu0
      %522 = vmatprep.mubr.f32.mxu0 0.0
      %523 = vmatmul.mubr.f32.gmra.mrb[0].mxu0 %v421
      %v524 = vpop.f32.mrb[0].mxu0
      %v525 = vadd.f32 %v396, %v524
      %v526 = vpop.f32.mrb[0].mxu0
      %527 = vdwg.mxu0
      %v528 = vmax.f32 %v490, 0.0
      %v529 = vmax.f32 %v495, 0.0
      %v530 = vmax.f32 %v500, 0.0
      %v531 = vmax.f32 %v505, 0.0
      %v532 = vmax.f32 %v510, 0.0
      %v533 = vmax.f32 %v515, 0.0
      %v534 = vmax.f32 %v520, 0.0
      %v535 = vmax.f32 %v525, 0.0
      %v536 = vld [vmem:[%s318] sm:$0xff]
      %v537 = vld [vmem:[%s318 + $0x8] sm:$0xff]
      %v538 = vld [vmem:[%s318 + $0x10] sm:$0xff]
      %v539 = vld [vmem:[%s318 + $0x18] sm:$0xff]
      %v540 = vld [vmem:[%s318 + $0x20] sm:$0xff]
      %v541 = vld [vmem:[%s318 + $0x28] sm:$0xff]
      %v542 = vld [vmem:[%s318 + $0x30] sm:$0xff]
      %v543 = vld [vmem:[%s318 + $0x38] sm:$0xff]
      %552 = vrot.lane.b32.xlu0 %v536, 32
      %v553 = vpop.permute.xlu0 %552
      %554 = vrot.lane.b32.xlu0 %v537, 32
      %v555 = vpop.permute.xlu0 %554
      %556 = vrot.lane.b32.xlu0 %v538, 32
      %v557 = vpop.permute.xlu0 %556
      %558 = vrot.lane.b32.xlu0 %v539, 32
      %v559 = vpop.permute.xlu0 %558
      %560 = vrot.lane.b32.xlu0 %v540, 32
      %v561 = vpop.permute.xlu0 %560
      %562 = vrot.lane.b32.xlu0 %v541, 32
      %v563 = vpop.permute.xlu0 %562
      %564 = vrot.lane.b32.xlu0 %v542, 32
      %v565 = vpop.permute.xlu0 %564
      %566 = vrot.lane.b32.xlu0 %v543, 32
      %v567 = vpop.permute.xlu0 %566
      %v576 = vsel %vm374, %v528, %v553
      %v577 = vsel %vm374, %v529, %v555
      %v578 = vsel %vm374, %v530, %v557
      %v579 = vsel %vm374, %v531, %v559
      %v580 = vsel %vm374, %v532, %v561
      %v581 = vsel %vm374, %v533, %v563
      %v582 = vsel %vm374, %v534, %v565
      %v583 = vsel %vm374, %v535, %v567
      %v584 = vld [vmem:[%s5] sm:$0xff]
      %v585 = vld [vmem:[%s5 + $0x8] sm:$0xff]
      %v586 = vld [vmem:[%s5 + $0x10] sm:$0xff]
      %v587 = vld [vmem:[%s5 + $0x18] sm:$0xff]
      %v588 = vld [vmem:[%s5 + $0x20] sm:$0xff]
      %v589 = vld [vmem:[%s5 + $0x28] sm:$0xff]
      %v590 = vld [vmem:[%s5 + $0x30] sm:$0xff]
      %v591 = vld [vmem:[%s5 + $0x38] sm:$0xff]
      %v592 = vld [vmem:[%s6] sm:$0x1]
      %v594 = vlaneseq
      %v595 = vshrl.u32 %v594, 7
      %v596 = vsub.s32 0, %v595
      %v597 = vrot.slane %v592, %v596
      %v600 = vsel %vm398, %v576, 0
      %v603 = vsel %vm398, %v577, 0
      %v606 = vsel %vm398, %v578, 0
      %v609 = vsel %vm398, %v579, 0
      %v612 = vsel %vm398, %v580, 0
      %v615 = vsel %vm398, %v581, 0
      %v618 = vsel %vm398, %v582, 0
      %v621 = vsel %vm398, %v583, 0
      %623 = vmatprep.subr.mxu0 0.0
      %624 = vmatpush1.msra.mxu0 %v584
      %625 = vmatprep.subr.mxu0 0.0
      %626 = vmatpush1.msra.mxu0 %v585
      %627 = vmatprep.subr.mxu0 0.0
      %628 = vmatpush1.msra.mxu0 %v586
      %629 = vmatprep.subr.mxu0 0.0
      %630 = vmatpush1.msra.mxu0 %v587
      %631 = vmatprep.subr.mxu0 0.0
      %632 = vmatpush1.msra.mxu0 %v588
      %633 = vmatprep.subr.mxu0 0.0
      %634 = vmatpush1.msra.mxu0 %v589
      %635 = vmatprep.subr.mxu0 0.0
      %636 = vmatpush1.msra.mxu0 %v590
      %637 = vmatprep.subr.mxu0 0.0
      %638 = vmatpush1.msra.mxu0 %v591
      %639 = vmatprep.subr.mxu0 0.0
      %640 = vmatpush1.msra.mxu0 0.0
      %641 = vmatprep.subr.mxu0 0.0
      %642 = vmatpush1.msra.mxu0 0.0
      %643 = vmatprep.subr.mxu0 0.0
      %644 = vmatpush1.msra.mxu0 0.0
      %645 = vmatprep.subr.mxu0 0.0
      %646 = vmatpush1.msra.mxu0 0.0
      %647 = vmatprep.subr.mxu0 0.0
      %648 = vmatpush1.msra.mxu0 0.0
      %649 = vmatprep.subr.mxu0 0.0
      %650 = vmatpush1.msra.mxu0 0.0
      %651 = vmatprep.subr.mxu0 0.0
      %652 = vmatpush1.msra.mxu0 0.0
      %653 = vmatprep.subr.mxu0 0.0
      %654 = vmatpush1.msra.mxu0 0.0
      %655 = vmatprep.subr.mxu0 0.0
      %656 = vmatpush1.msra.mxu0 0.0
      %657 = vmatprep.subr.mxu0 0.0
      %658 = vmatpush1.msra.mxu0 0.0
      %659 = vmatprep.subr.mxu0 0.0
      %660 = vmatpush1.msra.mxu0 0.0
      %661 = vmatprep.subr.mxu0 0.0
      %662 = vmatpush1.msra.mxu0 0.0
      %663 = vmatprep.subr.mxu0 0.0
      %664 = vmatpush1.msra.mxu0 0.0
      %665 = vmatprep.subr.mxu0 0.0
      %666 = vmatpush1.msra.mxu0 0.0
      %667 = vmatprep.subr.mxu0 0.0
      %668 = vmatpush1.msra.mxu0 0.0
      %669 = vmatprep.subr.mxu0 0.0
      %670 = vmatpush1.msra.mxu0 0.0
      %671 = vmatprep.subr.mxu0 0.0
      %672 = vmatpush1.msra.mxu0 0.0
      %673 = vmatprep.subr.mxu0 0.0
      %674 = vmatpush1.msra.mxu0 0.0
      %675 = vmatprep.subr.mxu0 0.0
      %676 = vmatpush1.msra.mxu0 0.0
      %677 = vmatprep.subr.mxu0 0.0
      %678 = vmatpush1.msra.mxu0 0.0
      %679 = vmatprep.subr.mxu0 0.0
      %680 = vmatpush1.msra.mxu0 0.0
      %681 = vmatprep.subr.mxu0 0.0
      %682 = vmatpush1.msra.mxu0 0.0
      %683 = vmatprep.subr.mxu0 0.0
      %684 = vmatpush1.msra.mxu0 0.0
      %685 = vmatprep.subr.mxu0 0.0
      %686 = vmatpush1.msra.mxu0 0.0
      %687 = vmatprep.mubr.f32.mxu0 0.0
      %688 = vmatmul.mubr.f32.gmra.mrb[0].mxu0 %v600
      %v689 = vpop.f32.mrb[0].mxu0
      %v690 = vadd.f32 %v597, %v689
      %v691 = vpop.f32.mrb[0].mxu0
      %692 = vmatprep.mubr.f32.mxu0 0.0
      %693 = vmatmul.mubr.f32.gmra.mrb[0].mxu0 %v603
      %v694 = vpop.f32.mrb[0].mxu0
      %v695 = vadd.f32 %v597, %v694
      %v696 = vpop.f32.mrb[0].mxu0
      %697 = vmatprep.mubr.f32.mxu0 0.0
      %698 = vmatmul.mubr.f32.gmra.mrb[0].mxu0 %v606
      %v699 = vpop.f32.mrb[0].mxu0
      %v700 = vadd.f32 %v597, %v699
      %v701 = vpop.f32.mrb[0].mxu0
      %702 = vmatprep.mubr.f32.mxu0 0.0
      %703 = vmatmul.mubr.f32.gmra.mrb[0].mxu0 %v609
      %v704 = vpop.f32.mrb[0].mxu0
      %v705 = vadd.f32 %v597, %v704
      %v706 = vpop.f32.mrb[0].mxu0
      %707 = vmatprep.mubr.f32.mxu0 0.0
      %708 = vmatmul.mubr.f32.gmra.mrb[0].mxu0 %v612
      %v709 = vpop.f32.mrb[0].mxu0
      %v710 = vadd.f32 %v597, %v709
      %v711 = vpop.f32.mrb[0].mxu0
      %712 = vmatprep.mubr.f32.mxu0 0.0
      %713 = vmatmul.mubr.f32.gmra.mrb[0].mxu0 %v615
      %v714 = vpop.f32.mrb[0].mxu0
      %v715 = vadd.f32 %v597, %v714
      %v716 = vpop.f32.mrb[0].mxu0
      %717 = vmatprep.mubr.f32.mxu0 0.0
      %718 = vmatmul.mubr.f32.gmra.mrb[0].mxu0 %v618
      %v719 = vpop.f32.mrb[0].mxu0
      %v720 = vadd.f32 %v597, %v719
      %v721 = vpop.f32.mrb[0].mxu0
      %722 = vmatprep.mubr.f32.mxu0 0.0
      %723 = vmatmul.mubr.f32.gmra.mrb[0].mxu0 %v621
      %v724 = vpop.f32.mrb[0].mxu0
      %v725 = vadd.f32 %v597, %v724
      %v726 = vpop.f32.mrb[0].mxu0
      %727 = vdwg.mxu0
      %v728 = vadd.f32 %v690, %v326
      %v729 = vadd.f32 %v695, %v327
      %v730 = vadd.f32 %v700, %v328
      %v731 = vadd.f32 %v705, %v329
      %v732 = vadd.f32 %v710, %v330
      %v733 = vadd.f32 %v715, %v331
      %v734 = vadd.f32 %v720, %v332
      %v735 = vadd.f32 %v725, %v333
      %736 = vst.msk [vmem:[%s324] sm:$0xff] %vm374, %v728
      %737 = vst.msk [vmem:[%s324 + $0x8] sm:$0xff] %vm374, %v729
      %738 = vst.msk [vmem:[%s324 + $0x10] sm:$0xff] %vm374, %v730
      %739 = vst.msk [vmem:[%s324 + $0x18] sm:$0xff] %vm374, %v731
      %740 = vst.msk [vmem:[%s324 + $0x20] sm:$0xff] %vm374, %v732
      %741 = vst.msk [vmem:[%s324 + $0x28] sm:$0xff] %vm374, %v733
      %742 = vst.msk [vmem:[%s324 + $0x30] sm:$0xff] %vm374, %v734
      %743 = vst.msk [vmem:[%s324 + $0x38] sm:$0xff] %vm374, %v735
      %s744 = smul.u32 8, %s18
      %p745 = scmp.lt.s32.totalorder %s744, 31
      %s746 = scalar_select %p745, %s744, 31
      %s747 = smul.addr %s746, 8
      %s748 = scalar_lea.vmem %s7, %s747
      // Predicated region
      $region49: #{tpu_custom_call.1} parent=47 // pred_check
        %p749 = pneg %p198
      $region50: #{tpu_custom_call.1} parent=47 // pred_check_branch
        %751 = sbr.rel (%p749) target = $region52
      $region51: #{tpu_custom_call.1} parent=47 // pred_region
        %s752 = smul.u32 8, %s18
      $region52: #{tpu_custom_call.1} parent=47 // pred_fallthru
        _
    $region48: #{tpu_custom_call.1} parent=5 // pred_fallthru
      _
    %p753 = scmp.le.s32.totalorder 2, %s13
    // Predicated region
    $region53: #{tpu_custom_call.1} parent=5 // pred_check
      %p754 = pneg %p753
    $region54: #{tpu_custom_call.1} parent=5 // pred_check_branch
      %756 = sbr.rel (%p754) target = $region56
    $region55: #{tpu_custom_call.1} parent=5 // pred_region
      %s757 = ssub.s32 %s13, 2
      // Predicated region
      $region57: #{tpu_custom_call.1} parent=55 // pred_check
        %p758 = pneg %p204
      $region58: #{tpu_custom_call.1} parent=55 // pred_check_branch
        %760 = sbr.rel (%p758) target = $region60
      $region59: #{tpu_custom_call.1} parent=55 // pred_region
        %s761 = smul.u32 8, %s19
        %p762 = scmp.lt.s32.totalorder %s761, 31
        %s763 = scalar_select %p762, %s761, 31
        %s764 = smul.addr %s763, 8
        %s765 = scalar_lea.vmem %s7, %s764
      $region60: #{tpu_custom_call.1} parent=55 // pred_fallthru
        _
    $region56: #{tpu_custom_call.1} parent=5 // pred_fallthru
      _
  $region6: #{tpu_custom_call.1} parent=0 // loop_footer
    %s17 = sadd.s32 1, %s13
  $region7: #{tpu_custom_call.1} parent=0 // loop_footer_branch
    %12 = sbr.rel target = $region3
  $region8: #{tpu_custom_call.1} parent=0 // loop_exit
    _

</llo_original>
